<compile_context>
chip_gen: v7x
topology: tpu7x:2x2x1
jax: 0.10.0
libtpu: 0.0.40
codegen_flags: <defaults>
</compile_context>

<pallas_src>
import jax
import jax.numpy as jnp
from jax.experimental import pallas as pl
from jax.experimental.pallas import tpu as pltpu


def _euclid_partial_kernel(a_ref, b_ref, o_ref):
    """Per-tile partial sum of row-wise L2 distances.

    a_ref, b_ref : (TB, D) VMEM tiles (input dtype; cast to f32 here).
    o_ref        : (1, 1) SMEM partial-sum output for this grid step.
    """
    a = a_ref[...].astype(jnp.float32)
    b = b_ref[...].astype(jnp.float32)
    diff = a - b                                           # VPU elementwise
    sq_sum = jnp.sum(diff * diff, axis=1, keepdims=True)   # (TB, 1) lane reduce
    o_ref[0, 0] = jnp.sum(jnp.sqrt(sq_sum))                # scalar per tile


def _round_up(x: int, m: int) -> int:
    return ((x + m - 1) // m) * m


def _pick_tile_rows(B: int, D: int, itemsize: int) -> int:
    # 2 inputs x 2 pipeline buffers x TB x D x itemsize <= ~24 MiB, leaving
    # headroom under the 32 MiB scoped VMEM limit (safe on v5e/v6e/v7x).
    budget_bytes = 24 * 1024 * 1024
    max_tb = budget_bytes // (2 * 2 * max(D, 1) * itemsize)
    tb = min(2048, max_tb, _round_up(B, 8))
    tb = max(8, (tb // 8) * 8)
    return tb


def euclidean_dist_loss(latent1: jax.Array, latent2: jax.Array,
                        *, force_pallas: bool = False) -> jax.Array:
    assert latent1.shape == latent2.shape and latent1.ndim == 2
    B, D = latent1.shape

    # Tiny inputs: pallas_call fixed overhead >> work; let XLA fuse it.
    if not force_pallas and B * D <= 4096:
        diff = latent1.astype(jnp.float32) - latent2.astype(jnp.float32)
        return jnp.mean(jnp.sqrt(jnp.sum(diff * diff, axis=1)))

    itemsize = jnp.dtype(latent1.dtype).itemsize
    tb = _pick_tile_rows(B, D, itemsize)
    b_pad = _round_up(B, tb)
    if b_pad != B:
        # Zero rows give ||0||_2 = 0, so they do not perturb the distance sum.
        pad = ((0, b_pad - B), (0, 0))
        latent1 = jnp.pad(latent1, pad)
        latent2 = jnp.pad(latent2, pad)
    num_tiles = b_pad // tb

    partials = pl.pallas_call(
        _euclid_partial_kernel,
        out_shape=jax.ShapeDtypeStruct((num_tiles, 1), jnp.float32),
        grid_spec=pltpu.PrefetchScalarGridSpec(
            num_scalar_prefetch=0,
            grid=(num_tiles,),
            in_specs=[
                pl.BlockSpec((tb, D), lambda i: (i, 0)),
                pl.BlockSpec((tb, D), lambda i: (i, 0)),
            ],
            out_specs=pl.BlockSpec(
                (1, 1), lambda i: (i, 0), memory_space=pltpu.SMEM
            ),
        ),
        compiler_params=pltpu.CompilerParams(
            dimension_semantics=("parallel",),
            vmem_limit_bytes=32 * 1024 * 1024,
        ),
    )(latent1, latent2)

    # Finish the mean: running sum of distances divided once by the true B.
    return jnp.sum(partials) / jnp.float32(B)


def _reference(latent1, latent2):
    # Pure-JAX reference mirroring the PyTorch module (f32 math).
    a = latent1.astype(jnp.float32)
    b = latent2.astype(jnp.float32)
    dist = jnp.sqrt(jnp.sum((a - b) ** 2, axis=1))
    return jnp.mean(dist)


if __name__ == "__main__":
    key = jax.random.PRNGKey(0)
    k1, k2, k3, k4 = jax.random.split(key, 4)

    # 1) Small shape consistent with the module (batch=2, hidden=32), forced
    #    through the Pallas kernel (also exercises zero-padding to 8 rows).
    B, D = 2, 32
    l1 = jax.random.normal(k1, (B, D), dtype=jnp.float32)
    l2 = jax.random.normal(k2, (B, D), dtype=jnp.float32)
    loss_small = jax.block_until_ready(
        euclidean_dist_loss(l1, l2, force_pallas=True))
    ref_small = _reference(l1, l2)
    assert jnp.allclose(loss_small, ref_small, rtol=1e-5, atol=1e-5), (
        loss_small, ref_small)

    # 2) Larger bf16 batch: exercises batch tiling (3 tiles of 2048 rows),
    #    double-buffered pipelining, and bf16-in / f32-accumulate.
    B2, D2 = 6144, 256
    l1b = jax.random.normal(k3, (B2, D2), dtype=jnp.float32).astype(jnp.bfloat16)
    l2b = jax.random.normal(k4, (B2, D2), dtype=jnp.float32).astype(jnp.bfloat16)
    loss_big = jax.block_until_ready(euclidean_dist_loss(l1b, l2b))
    ref_big = _reference(l1b, l2b)
    assert jnp.allclose(loss_big, ref_big, rtol=1e-4, atol=1e-4), (
        loss_big, ref_big)

    print("KERNEL_OK")
</pallas_src>

<mosaic_0001>
module attributes {stable_mosaic.version = 11 : i64} {
  func.func @_euclid_partial_kernel(%arg0: i32, %arg1: memref<8x32xf32, #tpu.memory_space<vmem>>, %arg2: memref<8x32xf32, #tpu.memory_space<vmem>>, %arg3: memref<1x1xf32, #tpu.memory_space<smem>>) attributes {dimension_semantics = [#tpu.dimension_semantics<parallel>], iteration_bounds = array<i64: 1>, scalar_prefetch = 0 : i64, scratch_operands = 0 : i64, tpu.core_type = #tpu.core_type<tc>, window_params = [{transform_indices = @transform_0, window_bounds = array<i64: 8, 32>}, {transform_indices = @transform_1, window_bounds = array<i64: 8, 32>}, {transform_indices = @transform_2, window_bounds = array<i64: 1, 1>}]} {
    %c0 = arith.constant 0 : index
    %c0_0 = arith.constant 0 : index
    %0 = vector.load %arg1[%c0, %c0_0] : memref<8x32xf32, #tpu.memory_space<vmem>>, vector<8x32xf32>
    %c0_1 = arith.constant 0 : index
    %c0_2 = arith.constant 0 : index
    %1 = vector.load %arg2[%c0_1, %c0_2] : memref<8x32xf32, #tpu.memory_space<vmem>>, vector<8x32xf32>
    %2 = arith.subf %0, %1 : vector<8x32xf32>
    %3 = arith.mulf %2, %2 : vector<8x32xf32>
    %cst = arith.constant dense<0.000000e+00> : vector<8xf32>
    %4 = vector.multi_reduction <add>, %3, %cst [1] : vector<8x32xf32> to vector<8xf32>
    %5 = vector.shape_cast %4 : vector<8xf32> to vector<8x1xf32>
    %6 = math.sqrt %5 : vector<8x1xf32>
    %7 = vector.shape_cast %6 : vector<8x1xf32> to vector<1x8x1xf32>
    %cst_3 = arith.constant dense<0.000000e+00> : vector<1xf32>
    %8 = vector.multi_reduction <add>, %7, %cst_3 [1, 2] : vector<1x8x1xf32> to vector<1xf32>
    %9 = vector.shape_cast %8 : vector<1xf32> to vector<1x1x1xf32>
    %10 = vector.extract %9[0, 0, 0] : f32 from vector<1x1x1xf32>
    %c0_4 = arith.constant 0 : index
    %c0_5 = arith.constant 0 : index
    %11 = memref.load %arg3[%c0_4, %c0_5] : memref<1x1xf32, #tpu.memory_space<smem>>
    memref.store %10, %arg3[%c0_4, %c0_5] : memref<1x1xf32, #tpu.memory_space<smem>>
    return
  }
  func.func @transform_0(%arg0: i32) -> (i32, i32) {
    %c0_i32 = arith.constant 0 : i32
    %c0_i32_0 = arith.constant 0 : i32
    return %arg0, %c0_i32 : i32, i32
  }
  func.func @transform_1(%arg0: i32) -> (i32, i32) {
    %c0_i32 = arith.constant 0 : i32
    %c0_i32_0 = arith.constant 0 : i32
    return %arg0, %c0_i32 : i32, i32
  }
  func.func @transform_2(%arg0: i32) -> (i32, i32) {
    %c0_i32 = arith.constant 0 : i32
    %c0_i32_0 = arith.constant 0 : i32
    return %arg0, %c0_i32 : i32, i32
  }
}

</mosaic_0001>

<llo_original>
// kernel: tpu_custom_call.1
$region0: #{tpu_custom_call.1}
  #allocation0 [shape = 'u32[]', space=smem, size = 0x4, offset = 0x4, fixed_abs, tag = 'smem constant byte address 0x4 - core index']
  #allocation1 [shape = 'u32[144,128]{1,0:T(1,128)}', space=vmem, size = 0x12000, scoped, tag = 'internal scratch']
  %s0 = inlined_call_operand.hbm [shape: f32[8,32], index: 0, kind: input, shape index: {}]
  %s1 = inlined_call_operand.hbm [shape: f32[8,32], index: 1, kind: input, shape index: {}]
  %s2 = inlined_call_operand.hbm [shape: f32[1,1], index: 2, kind: output, shape index: {}]
  %s3 = sld [smem:[#allocation0]]
  $region26: #{tpu_custom_call.1} parent=0
    _
  %s5 = ssub.s32 1, %s3
  %s6 = scalar_select 0, %s5, %s3
  $region1: #{tpu_custom_call.1} parent=0
    #allocation2 [shape = 'u8[4096]{0}', space=vmem, size = 0x1000, scoped, tag = 'input window, operand 0, single buffered']
    #allocation3 [shape = 's32[1]{0}', space=sflag, size = 0x4, scoped, tag = 'scoped memory for tpu_custom_call.1']
    #allocation4 [shape = 's32[1]{0}', space=sflag, size = 0x4, scoped, tag = 'scoped memory for tpu_custom_call.1']
    #allocation5 [shape = 'u8[4096]{0}', space=vmem, size = 0x1000, scoped, tag = 'input window, operand 1, single buffered']
    #allocation6 [shape = 's32[1]{0}', space=sflag, size = 0x4, scoped, tag = 'scoped memory for tpu_custom_call.1']
    #allocation7 [shape = 'u8[512]{0}', space=smem, size = 0x200, scoped, tag = 'output window, operand 0, single buffered']
    %7 = vsyncpa [#allocation3], 0
    %8 = vsyncpa [#allocation6], 0
    %9 = vsyncpa [#allocation4], 0
    // Predicated region
    $region2: #{tpu_custom_call.1} parent=1 // pred_check
      _
    $region3: #{tpu_custom_call.1} parent=1 // pred_check_branch
      %11 = sbr.rel (0) target = $region5
    $region4: #{tpu_custom_call.1} parent=1 // pred_region
      %s13 = ssub.s32 128, 128
      %14 = vsyncadd [#allocation3], %s13
      %s16 = sshll.u32 [#allocation2], 4
      %s17 = int_to_ptr.vmem [resolvable:$true] %s16
      %19 = dma.hbm_to_vmem [thread:$0]  %s0, 128, %s17, [#allocation3]
    $region5: #{tpu_custom_call.1} parent=1 // pred_fallthru
      _
    // Predicated region
    $region6: #{tpu_custom_call.1} parent=1 // pred_check
      _
    $region7: #{tpu_custom_call.1} parent=1 // pred_check_branch
      %21 = sbr.rel (0) target = $region9
    $region8: #{tpu_custom_call.1} parent=1 // pred_region
      %s23 = ssub.s32 128, 128
      %24 = vsyncadd [#allocation6], %s23
      %s26 = sshll.u32 [#allocation5], 4
      %s27 = int_to_ptr.vmem [resolvable:$true] %s26
      %29 = dma.hbm_to_vmem [thread:$0]  %s1, 128, %s27, [#allocation6]
    $region9: #{tpu_custom_call.1} parent=1 // pred_fallthru
      _
    // Predicated region
    $region10: #{tpu_custom_call.1} parent=1 // pred_check
      _
    $region11: #{tpu_custom_call.1} parent=1 // pred_check_branch
      %31 = sbr.rel (0) target = $region13
    $region12: #{tpu_custom_call.1} parent=1 // pred_region
      %32 = dma.done [#allocation3], 128
    $region13: #{tpu_custom_call.1} parent=1 // pred_fallthru
      _
    // Predicated region
    $region14: #{tpu_custom_call.1} parent=1 // pred_check
      _
    $region15: #{tpu_custom_call.1} parent=1 // pred_check_branch
      %34 = sbr.rel (0) target = $region17
    $region16: #{tpu_custom_call.1} parent=1 // pred_region
      %35 = dma.done [#allocation6], 128
    $region17: #{tpu_custom_call.1} parent=1 // pred_fallthru
      _
    %v36 = vld [vmem:[#allocation2] sm:$0xff]
    %v37 = vld [vmem:[#allocation5] sm:$0xff]
    %v38 = vsub.f32 %v36, %v37
    %v39 = vmul.f32 %v38, %v38
    %vm40 = vcmask 261120
    %v41 = vsel %vm40, %v39, 0.0
    %42 = vadd.xlane.f32.xlu0 %v41
    %v43 = vpop.xlane.xlu0 %42
    %v44 = vrsqrt.pop %v43
    %v45 = vmul.f32 %v43, %v44
    %vm46 = vcmp.eq.f32.partialorder %v43, inf
    %v47 = vsel %vm46, %v43, %v45
    %vm48 = vcmp.eq.f32.partialorder %v43, 0.0
    %v49 = vand.u32 %v43, 2147483648
    %v50 = vsel %vm48, %v49, %v47
    %vm51 = vcmask 7168
    %v52 = vsel %vm51, %v50, 0.0
    %53 = vadd.xlane.f32.xlu0 %v52
    %v54 = vpop.xlane.xlu0 %53
    %v55 = vrot.slane %v54, 4
    %v56 = vadd.f32 %v54, %v55
    %v57 = vrot.slane %v56, 2
    %v58 = vadd.f32 %v56, %v57
    %v59 = vrot.slane %v58, 1
    %v60 = vadd.f32 %v58, %v59
    %s61 = vtos %v60
    %s62 = scalar_lea.smem [#allocation7], 0
    %63 = sst [smem:[%s62]] %s61
    // Predicated region
    $region18: #{tpu_custom_call.1} parent=1 // pred_check
      _
    $region19: #{tpu_custom_call.1} parent=1 // pred_check_branch
      %65 = sbr.rel (0) target = $region21
    $region20: #{tpu_custom_call.1} parent=1 // pred_region
      %s67 = ssub.s32 16, 16
      %68 = vsyncadd [#allocation4], %s67
      %71 = dma.smem_to_hbm [#allocation7], 16, %s2, [#allocation4]
    $region21: #{tpu_custom_call.1} parent=1 // pred_fallthru
      _
    // Predicated region
    $region22: #{tpu_custom_call.1} parent=1 // pred_check
      _
    $region23: #{tpu_custom_call.1} parent=1 // pred_check_branch
      %73 = sbr.rel (0) target = $region25
    $region24: #{tpu_custom_call.1} parent=1 // pred_region
      %74 = dma.done [#allocation4], 16
    $region25: #{tpu_custom_call.1} parent=1 // pred_fallthru
      _
    %75 = sfence
    %76 = vsyncpa [#allocation3], 1
    %77 = vsyncpa [#allocation6], 1
    %78 = vsyncpa [#allocation4], 1

</llo_original>
